<compile_context>
chip_gen: v5e
topology: v5e:2x2
jax: 0.10.0
libtpu: 0.0.40
codegen_flags: <defaults>
</compile_context>

<pallas_src>
import functools

import jax
import jax.numpy as jnp
from jax.experimental import pallas as pl
from jax.experimental.pallas import tpu as pltpu

_NEG = -1e30  # bias fill for padded class columns -> exp() underflows to 0


def _round_up(x, m):
    return ((x + m - 1) // m) * m


def _num_tensorcores():
    """TensorCores per chip: v7x has 2, earlier generations have 1."""
    try:
        kind = (getattr(jax.devices()[0], "device_kind", "") or "").lower()
        if "v7" in kind:
            return 2
    except Exception:
        pass
    return 1


def classifier_kernel(x_ref, w1_ref, b1_ref, w2_ref, b2_ref, o_ref):
    # lin1 + ReLU (MXU matmul, f32 accumulate; bias broadcast over sublanes).
    x = x_ref[...]
    h = jnp.dot(x, w1_ref[...], preferred_element_type=jnp.float32) + b1_ref[...]
    h = jnp.maximum(h, 0.0)

    # TODO(synk): F.dropout with training=True (stateful PRNG masking via
    # pltpu.prng_seed / pltpu.prng_random_bits) not implemented; the module is
    # evaluated in inference mode where dropout is the identity.

    # lin2
    logits = jnp.dot(h, w2_ref[...], preferred_element_type=jnp.float32) + b2_ref[...]

    # Numerically stable log_softmax over the lane (class) axis.  Padded class
    # columns carry a -1e30 bias, so they do not perturb max or the sum.
    m = jnp.max(logits, axis=-1, keepdims=True)
    shifted = logits - m
    lse = jnp.log(jnp.sum(jnp.exp(shifted), axis=-1, keepdims=True))
    o_ref[...] = (shifted - lse).astype(o_ref.dtype)


def prepare_classifier_params(w1, b1, w2, b2):
    """One-time (setup-time) parameter padding — NOT in the per-call hot path.

    w1: [nhid, nhid]        ([in, out] layout)
    b1: [nhid] / [1, nhid]
    w2: [nhid, num_classes] ([in, out] layout)
    b2: [num_classes] / [1, num_classes]

    Returns (w1p, b1p, w2p, b2p) padded to lane-dense (multiple-of-128) output
    axes.  Padded hidden columns get zero bias (ReLU(0) = 0, so they feed
    zeros into lin2's padded rows); padded class columns get a -1e30 bias so
    they drop out of the softmax.
    """
    NH = w1.shape[0]
    C = w2.shape[1]
    NHp = _round_up(NH, 128)
    Cp = _round_up(C, 128)

    w1p = jnp.pad(jnp.asarray(w1, jnp.float32), ((0, 0), (0, NHp - NH)))
    b1p = jnp.pad(jnp.reshape(jnp.asarray(b1, jnp.float32), (1, NH)),
                  ((0, 0), (0, NHp - NH)))
    w2p = jnp.pad(jnp.asarray(w2, jnp.float32),
                  ((0, NHp - NH), (0, Cp - C)))
    b2p = jnp.pad(jnp.reshape(jnp.asarray(b2, jnp.float32), (1, C)),
                  ((0, 0), (0, Cp - C)), constant_values=_NEG)
    return w1p, b1p, w2p, b2p


@functools.partial(jax.jit, static_argnames=("num_classes", "num_cores"))
def classifier_forward(x, w1p, b1p, w2p, b2p, *, num_classes, num_cores=1):
    """Classifier forward pass with pre-padded params.

    x : [B, nhid] f32 (streamed unpadded along the lane axis)
    returns [B, num_classes] log-probabilities.
    """
    B, NH = x.shape
    NHp = w1p.shape[1]
    Cp = w2p.shape[1]

    # ---- Grid sizing ------------------------------------------------------
    # Per-grid-step overhead is ~0.35 us; for single-TC chips (v5e/v6e) run a
    # single big step, for v7x split the batch into one balanced step per
    # TensorCore.  Cap TB so very large batches still pipeline / fit VMEM.
    MAX_TB = 512
    TB = min(max(_round_up(-(-B // num_cores), 8), 8), MAX_TB)
    Bp = _round_up(B, TB)
    grid = (Bp // TB,)

    # Only pad batch rows when needed; lanes stay at NH (full-dim block width).
    xp = x.astype(jnp.float32)
    if Bp != B:
        xp = jnp.pad(xp, ((0, Bp - B), (0, 0)))

    # Explicit VMEM budget: double-buffered x/out tiles, (possibly
    # double-buffered) resident weights, plus h/logits intermediates.  Guards
    # against v7x's smaller (64 MiB physical / 32 MiB scoped-default) VMEM.
    # NOTE: if NHp**2 * 4B ever approaches this budget (nhid >~ 2.5k), switch
    # to a K-tiled grid axis with a VMEM f32 accumulator instead of a fully
    # resident w1.
    vmem_bytes = 4 * (2 * (TB * NH + TB * Cp)
                      + 2 * (NH * NHp + NHp + NHp * Cp + Cp)
                      + 2 * (TB * NHp + TB * Cp))
    vmem_limit = int(min(96 * 1024 * 1024, max(vmem_bytes, 16 * 1024 * 1024)))

    cost = pl.CostEstimate(
        flops=2 * Bp * NH * NHp + 2 * Bp * NHp * Cp,
        transcendentals=Bp * Cp + Bp,
        bytes_accessed=4 * (Bp * NH + NH * NHp + NHp + NHp * Cp + Cp + Bp * Cp),
    )

    out = pl.pallas_call(
        classifier_kernel,
        out_shape=jax.ShapeDtypeStruct((Bp, Cp), jnp.float32),
        grid=grid,
        in_specs=[
            pl.BlockSpec((TB, NH), lambda i: (i, 0)),    # x  : streamed, unpadded lanes
            pl.BlockSpec((NH, NHp), lambda i: (0, 0)),   # w1 : resident in VMEM
            pl.BlockSpec((1, NHp), lambda i: (0, 0)),    # b1 : resident
            pl.BlockSpec((NHp, Cp), lambda i: (0, 0)),   # w2 : resident
            pl.BlockSpec((1, Cp), lambda i: (0, 0)),     # b2 : resident
        ],
        out_specs=pl.BlockSpec((TB, Cp), lambda i: (i, 0)),  # lane-dense vst
        compiler_params=pltpu.CompilerParams(
            dimension_semantics=("parallel",),           # megacore split on v7x
            vmem_limit_bytes=vmem_limit,
        ),
        cost_estimate=cost,
    )(xp, w1p, b1p, w2p, b2p)

    # Strip the batch / class padding.  (If the consumer lives inside the same
    # jit, prefer returning the padded slab and slicing lazily downstream.)
    return out[:B, :num_classes]


def reference_forward(x, w1, b1, w2, b2):
    h = jnp.maximum(x @ w1 + jnp.reshape(b1, (1, -1)), 0.0)
    logits = h @ w2 + jnp.reshape(b2, (1, -1))
    return jax.nn.log_softmax(logits, axis=-1)


if __name__ == "__main__":
    # Shapes consistent with the module: nhid=32, num_classes=8.  Batch=256 so
    # the grid is one step on v5e/v6e and two balanced steps on v7x.
    B, nhid, num_classes = 256, 32, 8

    key = jax.random.PRNGKey(0)
    kx, kw1, kb1, kw2, kb2 = jax.random.split(key, 5)

    x = jax.random.normal(kx, (B, nhid), dtype=jnp.float32)

    # Deterministic parameter init (Kaiming-uniform-like bounds, as nn.Linear),
    # in the [in_features, out_features] layout the wrapper expects.
    bound = 1.0 / (nhid ** 0.5)
    w1 = jax.random.uniform(kw1, (nhid, nhid), minval=-bound, maxval=bound,
                            dtype=jnp.float32)
    b1 = jax.random.uniform(kb1, (1, nhid), minval=-bound, maxval=bound,
                            dtype=jnp.float32)
    w2 = jax.random.uniform(kw2, (nhid, num_classes), minval=-bound, maxval=bound,
                            dtype=jnp.float32)
    b2 = jax.random.uniform(kb2, (1, num_classes), minval=-bound, maxval=bound,
                            dtype=jnp.float32)

    # One-time setup: pad weights/biases outside the per-call hot path.
    w1p, b1p, w2p, b2p = prepare_classifier_params(w1, b1, w2, b2)
    num_cores = _num_tensorcores()

    out = classifier_forward(x, w1p, b1p, w2p, b2p,
                             num_classes=num_classes, num_cores=num_cores)
    out = jax.block_until_ready(out)

    ref = reference_forward(x, w1, b1, w2, b2)
    assert out.shape == (B, num_classes)
    assert jnp.allclose(out, ref, atol=1e-5, rtol=1e-5), "mismatch vs reference"

    print("KERNEL_OK")
</pallas_src>

<mosaic_0001>
module attributes {stable_mosaic.version = 11 : i64} {
  func.func @classifier_kernel(%arg0: i32, %arg1: memref<256x32xf32, #tpu.memory_space<vmem>>, %arg2: memref<32x128xf32, #tpu.memory_space<vmem>>, %arg3: memref<1x128xf32, #tpu.memory_space<vmem>>, %arg4: memref<128x128xf32, #tpu.memory_space<vmem>>, %arg5: memref<1x128xf32, #tpu.memory_space<vmem>>, %arg6: memref<256x128xf32, #tpu.memory_space<vmem>>) attributes {dimension_semantics = [#tpu.dimension_semantics<parallel>], iteration_bounds = array<i64: 1>, scalar_prefetch = 0 : i64, scratch_operands = 0 : i64, tpu.core_type = #tpu.core_type<tc>, window_params = [{transform_indices = @transform_0, window_bounds = array<i64: 256, 32>}, {pipeline_mode = #tpu.pipeline_mode<synchronous>, transform_indices = @transform_1, window_bounds = array<i64: 32, 128>}, {pipeline_mode = #tpu.pipeline_mode<synchronous>, transform_indices = @transform_2, window_bounds = array<i64: 1, 128>}, {pipeline_mode = #tpu.pipeline_mode<synchronous>, transform_indices = @transform_3, window_bounds = array<i64: 128, 128>}, {pipeline_mode = #tpu.pipeline_mode<synchronous>, transform_indices = @transform_4, window_bounds = array<i64: 1, 128>}, {transform_indices = @transform_5, window_bounds = array<i64: 256, 128>}]} {
    %c0 = arith.constant 0 : index
    %c0_0 = arith.constant 0 : index
    %0 = vector.load %arg1[%c0, %c0_0] : memref<256x32xf32, #tpu.memory_space<vmem>>, vector<256x32xf32>
    %c0_1 = arith.constant 0 : index
    %c0_2 = arith.constant 0 : index
    %1 = vector.load %arg2[%c0_1, %c0_2] : memref<32x128xf32, #tpu.memory_space<vmem>>, vector<32x128xf32>
    %cst = arith.constant dense<0.000000e+00> : vector<256x128xf32>
    %2 = tpu.matmul %0, %1, %cst {dimension_numbers = #tpu.dot_dimension_numbers<[1], [0], [0], [1], [0, 0, 1, 1], [], []>} : vector<256x32xf32>, vector<32x128xf32>, vector<256x128xf32> -> vector<256x128xf32>
    %c0_3 = arith.constant 0 : index
    %c0_4 = arith.constant 0 : index
    %3 = vector.load %arg3[%c0_3, %c0_4] : memref<1x128xf32, #tpu.memory_space<vmem>>, vector<1x128xf32>
    %4 = vector.broadcast %3 : vector<1x128xf32> to vector<256x128xf32>
    %5 = arith.addf %2, %4 : vector<256x128xf32>
    %cst_5 = arith.constant 0.000000e+00 : f32
    %6 = vector.broadcast %cst_5 : f32 to vector<256x128xf32>
    %7 = arith.maximumf %5, %6 : vector<256x128xf32>
    %c0_6 = arith.constant 0 : index
    %c0_7 = arith.constant 0 : index
    %8 = vector.load %arg4[%c0_6, %c0_7] : memref<128x128xf32, #tpu.memory_space<vmem>>, vector<128x128xf32>
    %cst_8 = arith.constant dense<0.000000e+00> : vector<256x128xf32>
    %9 = tpu.matmul %7, %8, %cst_8 {dimension_numbers = #tpu.dot_dimension_numbers<[1], [0], [0], [1], [0, 0, 1, 1], [], []>} : vector<256x128xf32>, vector<128x128xf32>, vector<256x128xf32> -> vector<256x128xf32>
    %c0_9 = arith.constant 0 : index
    %c0_10 = arith.constant 0 : index
    %10 = vector.load %arg5[%c0_9, %c0_10] : memref<1x128xf32, #tpu.memory_space<vmem>>, vector<1x128xf32>
    %11 = vector.broadcast %10 : vector<1x128xf32> to vector<256x128xf32>
    %12 = arith.addf %9, %11 : vector<256x128xf32>
    %cst_11 = arith.constant dense<0xFF800000> : vector<256xf32>
    %13 = vector.multi_reduction <maximumf>, %12, %cst_11 [1] : vector<256x128xf32> to vector<256xf32>
    %14 = vector.shape_cast %13 : vector<256xf32> to vector<256x1xf32>
    %15 = vector.broadcast %14 : vector<256x1xf32> to vector<256x128xf32>
    %16 = arith.subf %12, %15 : vector<256x128xf32>
    %17 = math.exp %16 : vector<256x128xf32>
    %cst_12 = arith.constant dense<0.000000e+00> : vector<256xf32>
    %18 = vector.multi_reduction <add>, %17, %cst_12 [1] : vector<256x128xf32> to vector<256xf32>
    %19 = vector.shape_cast %18 : vector<256xf32> to vector<256x1xf32>
    %20 = math.log %19 : vector<256x1xf32>
    %21 = vector.broadcast %20 : vector<256x1xf32> to vector<256x128xf32>
    %22 = arith.subf %16, %21 : vector<256x128xf32>
    %c0_13 = arith.constant 0 : index
    %c0_14 = arith.constant 0 : index
    %23 = vector.load %arg6[%c0_13, %c0_14] : memref<256x128xf32, #tpu.memory_space<vmem>>, vector<256x128xf32>
    tpu.vector_store %arg6[%c0_13, %c0_14], %22 {strides = array<i32>} : memref<256x128xf32, #tpu.memory_space<vmem>>, vector<256x128xf32>,
    return
  }
  func.func @transform_0(%arg0: i32) -> (i32, i32) {
    %c0_i32 = arith.constant 0 : i32
    %c0_i32_0 = arith.constant 0 : i32
    return %arg0, %c0_i32 : i32, i32
  }
  func.func @transform_1(%arg0: i32) -> (i32, i32) {
    %c0_i32 = arith.constant 0 : i32
    %c0_i32_0 = arith.constant 0 : i32
    %c0_i32_1 = arith.constant 0 : i32
    return %c0_i32, %c0_i32_0 : i32, i32
  }
  func.func @transform_2(%arg0: i32) -> (i32, i32) {
    %c0_i32 = arith.constant 0 : i32
    %c0_i32_0 = arith.constant 0 : i32
    %c0_i32_1 = arith.constant 0 : i32
    return %c0_i32, %c0_i32_0 : i32, i32
  }
  func.func @transform_3(%arg0: i32) -> (i32, i32) {
    %c0_i32 = arith.constant 0 : i32
    %c0_i32_0 = arith.constant 0 : i32
    %c0_i32_1 = arith.constant 0 : i32
    return %c0_i32, %c0_i32_0 : i32, i32
  }
  func.func @transform_4(%arg0: i32) -> (i32, i32) {
    %c0_i32 = arith.constant 0 : i32
    %c0_i32_0 = arith.constant 0 : i32
    %c0_i32_1 = arith.constant 0 : i32
    return %c0_i32, %c0_i32_0 : i32, i32
  }
  func.func @transform_5(%arg0: i32) -> (i32, i32) {
    %c0_i32 = arith.constant 0 : i32
    %c0_i32_0 = arith.constant 0 : i32
    return %arg0, %c0_i32 : i32, i32
  }
}

</mosaic_0001>

<llo_original>
// kernel: classifier_forward.1
$region0: #{classifier_forward.1}
  #allocation0 [shape = 'u32[]', space=smem, size = 0x4, offset = 0x4, fixed_abs, tag = 'smem constant byte address 0x4 - core index']
  #allocation1 [shape = 'u32[72,128]{1,0:T(1,128)}', space=vmem, size = 0x9000, scoped, tag = 'internal scratch']
  %s0 = inlined_call_operand.vmem [shape: f32[256,32], index: 0, kind: input, shape index: {}]
  %s1 = inlined_call_operand.vmem [shape: f32[32,128], index: 1, kind: input, shape index: {}]
  %s2 = inlined_call_operand.vmem [shape: f32[1,128], index: 2, kind: input, shape index: {}]
  %s3 = inlined_call_operand.vmem [shape: f32[128,128], index: 3, kind: input, shape index: {}]
  %s4 = inlined_call_operand.vmem [shape: f32[1,128], index: 4, kind: input, shape index: {}]
  %s5 = inlined_call_operand.vmem [shape: f32[256,128], index: 5, kind: output, shape index: {}]
  %s6 = sld [smem:[#allocation0]]
  $region30: #{classifier_forward.1} parent=0
    _
  %s8 = ssub.s32 1, %s6
  %s9 = scalar_select 0, %s8, %s6
  // Predicated region
  $region2: #{classifier_forward.1} parent=0 // pred_check
    _
  $region3: #{classifier_forward.1} parent=0 // pred_check_branch
    %11 = sbr.rel (0) target = $region5
  $region4: #{classifier_forward.1} parent=0 // pred_region
    _
  $region5: #{classifier_forward.1} parent=0 // pred_fallthru
    _
  // Predicated region
  $region6: #{classifier_forward.1} parent=0 // pred_check
    _
  $region7: #{classifier_forward.1} parent=0 // pred_check_branch
    %13 = sbr.rel (0) target = $region9
  $region8: #{classifier_forward.1} parent=0 // pred_region
    _
  $region9: #{classifier_forward.1} parent=0 // pred_fallthru
    _
  // Predicated region
  $region10: #{classifier_forward.1} parent=0 // pred_check
    _
  $region11: #{classifier_forward.1} parent=0 // pred_check_branch
    %15 = sbr.rel (0) target = $region13
  $region12: #{classifier_forward.1} parent=0 // pred_region
    _
  $region13: #{classifier_forward.1} parent=0 // pred_fallthru
    _
  // Predicated region
  $region14: #{classifier_forward.1} parent=0 // pred_check
    _
  $region15: #{classifier_forward.1} parent=0 // pred_check_branch
    %17 = sbr.rel (0) target = $region17
  $region16: #{classifier_forward.1} parent=0 // pred_region
    _
  $region17: #{classifier_forward.1} parent=0 // pred_fallthru
    _
  // Predicated region
  $region18: #{classifier_forward.1} parent=0 // pred_check
    _
  $region19: #{classifier_forward.1} parent=0 // pred_check_branch
    %19 = sbr.rel (0) target = $region21
  $region20: #{classifier_forward.1} parent=0 // pred_region
    _
  $region21: #{classifier_forward.1} parent=0 // pred_fallthru
    _
  %v20 = vld [vmem:[%s0] sm:$0xff]
  %v21 = vld [vmem:[%s0 + $0x8] sm:$0xff]
  %v22 = vld [vmem:[%s0 + $0x10] sm:$0xff]
  %v23 = vld [vmem:[%s0 + $0x18] sm:$0xff]
  %v24 = vld [vmem:[%s0 + $0x20] sm:$0xff]
  %v25 = vld [vmem:[%s0 + $0x28] sm:$0xff]
  %v26 = vld [vmem:[%s0 + $0x30] sm:$0xff]
  %v27 = vld [vmem:[%s0 + $0x38] sm:$0xff]
  %v28 = vld [vmem:[%s0 + $0x40] sm:$0xff]
  %v29 = vld [vmem:[%s0 + $0x48] sm:$0xff]
  %v30 = vld [vmem:[%s0 + $0x50] sm:$0xff]
  %v31 = vld [vmem:[%s0 + $0x58] sm:$0xff]
  %v32 = vld [vmem:[%s0 + $0x60] sm:$0xff]
  %v33 = vld [vmem:[%s0 + $0x68] sm:$0xff]
  %v34 = vld [vmem:[%s0 + $0x70] sm:$0xff]
  %v35 = vld [vmem:[%s0 + $0x78] sm:$0xff]
  %v36 = vld [vmem:[%s0 + $0x80] sm:$0xff]
  %v37 = vld [vmem:[%s0 + $0x88] sm:$0xff]
  %v38 = vld [vmem:[%s0 + $0x90] sm:$0xff]
  %v39 = vld [vmem:[%s0 + $0x98] sm:$0xff]
  %v40 = vld [vmem:[%s0 + $0xa0] sm:$0xff]
  %v41 = vld [vmem:[%s0 + $0xa8] sm:$0xff]
  %v42 = vld [vmem:[%s0 + $0xb0] sm:$0xff]
  %v43 = vld [vmem:[%s0 + $0xb8] sm:$0xff]
  %v44 = vld [vmem:[%s0 + $0xc0] sm:$0xff]
  %v45 = vld [vmem:[%s0 + $0xc8] sm:$0xff]
  %v46 = vld [vmem:[%s0 + $0xd0] sm:$0xff]
  %v47 = vld [vmem:[%s0 + $0xd8] sm:$0xff]
  %v48 = vld [vmem:[%s0 + $0xe0] sm:$0xff]
  %v49 = vld [vmem:[%s0 + $0xe8] sm:$0xff]
  %v50 = vld [vmem:[%s0 + $0xf0] sm:$0xff]
  %v51 = vld [vmem:[%s0 + $0xf8] sm:$0xff]
  %v52 = vld [vmem:[%s1] sm:$0xff]
  %v53 = vld [vmem:[%s1 + $0x8] sm:$0xff]
  %v54 = vld [vmem:[%s1 + $0x10] sm:$0xff]
  %v55 = vld [vmem:[%s1 + $0x18] sm:$0xff]
  %v56 = vld [vmem:[%s2] sm:$0x1]
  %v58 = vperm.slane %v56, 0
  %vm60 = vcmask 261120
  %v62 = vsel %vm60, %v20, 0
  %v65 = vsel %vm60, %v21, 0
  %v68 = vsel %vm60, %v22, 0
  %v71 = vsel %vm60, %v23, 0
  %v74 = vsel %vm60, %v24, 0
  %v77 = vsel %vm60, %v25, 0
  %v80 = vsel %vm60, %v26, 0
  %v83 = vsel %vm60, %v27, 0
  %v86 = vsel %vm60, %v28, 0
  %v89 = vsel %vm60, %v29, 0
  %v92 = vsel %vm60, %v30, 0
  %v95 = vsel %vm60, %v31, 0
  %v98 = vsel %vm60, %v32, 0
  %v101 = vsel %vm60, %v33, 0
  %v104 = vsel %vm60, %v34, 0
  %v107 = vsel %vm60, %v35, 0
  %v110 = vsel %vm60, %v36, 0
  %v113 = vsel %vm60, %v37, 0
  %v116 = vsel %vm60, %v38, 0
  %v119 = vsel %vm60, %v39, 0
  %v122 = vsel %vm60, %v40, 0
  %v125 = vsel %vm60, %v41, 0
  %v128 = vsel %vm60, %v42, 0
  %v131 = vsel %vm60, %v43, 0
  %v134 = vsel %vm60, %v44, 0
  %v137 = vsel %vm60, %v45, 0
  %v140 = vsel %vm60, %v46, 0
  %v143 = vsel %vm60, %v47, 0
  %v146 = vsel %vm60, %v48, 0
  %v149 = vsel %vm60, %v49, 0
  %v152 = vsel %vm60, %v50, 0
  %v155 = vsel %vm60, %v51, 0
  %157 = vmatpush.msra.mxu0 0.0
  %158 = vmatpush.msra.mxu0 0.0
  %159 = vmatpush.msra.mxu0 0.0
  %160 = vmatpush.msra.mxu0 0.0
  %161 = vmatpush.msra.mxu0 0.0
  %162 = vmatpush.msra.mxu0 0.0
  %163 = vmatpush.msra.mxu0 0.0
  %164 = vmatpush.msra.mxu0 0.0
  %165 = vmatpush.msra.mxu0 0.0
  %166 = vmatpush.msra.mxu0 0.0
  %167 = vmatpush.msra.mxu0 0.0
  %168 = vmatpush.msra.mxu0 0.0
  %169 = vmatpush.msra.mxu0 %v55
  %170 = vmatpush.msra.mxu0 %v54
  %171 = vmatpush.msra.mxu0 %v53
  %172 = vmatpush.msra.mxu0 %v52
  %173 = vmatmul.f32.gmra.mxu0 %v62
  %v174 = vpop.f32.mrf.mxu0
  %v175 = vadd.f32 %v58, %v174
  %176 = vmatmul.f32.gmra.mxu0 %v65
  %v177 = vpop.f32.mrf.mxu0
  %v178 = vadd.f32 %v58, %v177
  %179 = vmatmul.f32.gmra.mxu0 %v68
  %v180 = vpop.f32.mrf.mxu0
  %v181 = vadd.f32 %v58, %v180
  %182 = vmatmul.f32.gmra.mxu0 %v71
  %v183 = vpop.f32.mrf.mxu0
  %v184 = vadd.f32 %v58, %v183
  %185 = vmatmul.f32.gmra.mxu0 %v74
  %v186 = vpop.f32.mrf.mxu0
  %v187 = vadd.f32 %v58, %v186
  %188 = vmatmul.f32.gmra.mxu0 %v77
  %v189 = vpop.f32.mrf.mxu0
  %v190 = vadd.f32 %v58, %v189
  %191 = vmatmul.f32.gmra.mxu0 %v80
  %v192 = vpop.f32.mrf.mxu0
  %v193 = vadd.f32 %v58, %v192
  %194 = vmatmul.f32.gmra.mxu0 %v83
  %v195 = vpop.f32.mrf.mxu0
  %v196 = vadd.f32 %v58, %v195
  %197 = vmatmul.f32.gmra.mxu0 %v86
  %v198 = vpop.f32.mrf.mxu0
  %v199 = vadd.f32 %v58, %v198
  %200 = vmatmul.f32.gmra.mxu0 %v89
  %v201 = vpop.f32.mrf.mxu0
  %v202 = vadd.f32 %v58, %v201
  %203 = vmatmul.f32.gmra.mxu0 %v92
  %v204 = vpop.f32.mrf.mxu0
  %v205 = vadd.f32 %v58, %v204
  %206 = vmatmul.f32.gmra.mxu0 %v95
  %v207 = vpop.f32.mrf.mxu0
  %v208 = vadd.f32 %v58, %v207
  %209 = vmatmul.f32.gmra.mxu0 %v98
  %v210 = vpop.f32.mrf.mxu0
  %v211 = vadd.f32 %v58, %v210
  %212 = vmatmul.f32.gmra.mxu0 %v101
  %v213 = vpop.f32.mrf.mxu0
  %v214 = vadd.f32 %v58, %v213
  %215 = vmatmul.f32.gmra.mxu0 %v104
  %v216 = vpop.f32.mrf.mxu0
  %v217 = vadd.f32 %v58, %v216
  %218 = vmatmul.f32.gmra.mxu0 %v107
  %v219 = vpop.f32.mrf.mxu0
  %v220 = vadd.f32 %v58, %v219
  %221 = vmatmul.f32.gmra.mxu0 %v110
  %v222 = vpop.f32.mrf.mxu0
  %v223 = vadd.f32 %v58, %v222
  %224 = vmatmul.f32.gmra.mxu0 %v113
  %v225 = vpop.f32.mrf.mxu0
  %v226 = vadd.f32 %v58, %v225
  %227 = vmatmul.f32.gmra.mxu0 %v116
  %v228 = vpop.f32.mrf.mxu0
  %v229 = vadd.f32 %v58, %v228
  %230 = vmatmul.f32.gmra.mxu0 %v119
  %v231 = vpop.f32.mrf.mxu0
  %v232 = vadd.f32 %v58, %v231
  %233 = vmatmul.f32.gmra.mxu0 %v122
  %v234 = vpop.f32.mrf.mxu0
  %v235 = vadd.f32 %v58, %v234
  %236 = vmatmul.f32.gmra.mxu0 %v125
  %v237 = vpop.f32.mrf.mxu0
  %v238 = vadd.f32 %v58, %v237
  %239 = vmatmul.f32.gmra.mxu0 %v128
  %v240 = vpop.f32.mrf.mxu0
  %v241 = vadd.f32 %v58, %v240
  %242 = vmatmul.f32.gmra.mxu0 %v131
  %v243 = vpop.f32.mrf.mxu0
  %v244 = vadd.f32 %v58, %v243
  %245 = vmatmul.f32.gmra.mxu0 %v134
  %v246 = vpop.f32.mrf.mxu0
  %v247 = vadd.f32 %v58, %v246
  %248 = vmatmul.f32.gmra.mxu0 %v137
  %v249 = vpop.f32.mrf.mxu0
  %v250 = vadd.f32 %v58, %v249
  %251 = vmatmul.f32.gmra.mxu0 %v140
  %v252 = vpop.f32.mrf.mxu0
  %v253 = vadd.f32 %v58, %v252
  %254 = vmatmul.f32.gmra.mxu0 %v143
  %v255 = vpop.f32.mrf.mxu0
  %v256 = vadd.f32 %v58, %v255
  %257 = vmatmul.f32.gmra.mxu0 %v146
  %v258 = vpop.f32.mrf.mxu0
  %v259 = vadd.f32 %v58, %v258
  %260 = vmatmul.f32.gmra.mxu0 %v149
  %v261 = vpop.f32.mrf.mxu0
  %v262 = vadd.f32 %v58, %v261
  %263 = vmatmul.f32.gmra.mxu0 %v152
  %v264 = vpop.f32.mrf.mxu0
  %v265 = vadd.f32 %v58, %v264
  %266 = vmatmul.f32.gmra.mxu0 %v155
  %v267 = vpop.f32.mrf.mxu0
  %v268 = vadd.f32 %v58, %v267
  %269 = vdwg.mxu0
  %v270 = vmax.f32 %v175, 0.0
  %v271 = vmax.f32 %v178, 0.0
  %v272 = vmax.f32 %v181, 0.0
  %v273 = vmax.f32 %v184, 0.0
  %v274 = vmax.f32 %v187, 0.0
  %v275 = vmax.f32 %v190, 0.0
  %v276 = vmax.f32 %v193, 0.0
  %v277 = vmax.f32 %v196, 0.0
  %v278 = vmax.f32 %v199, 0.0
  %v279 = vmax.f32 %v202, 0.0
  %v280 = vmax.f32 %v205, 0.0
  %v281 = vmax.f32 %v208, 0.0
  %v282 = vmax.f32 %v211, 0.0
  %v283 = vmax.f32 %v214, 0.0
  %v284 = vmax.f32 %v217, 0.0
  %v285 = vmax.f32 %v220, 0.0
  %v286 = vmax.f32 %v223, 0.0
  %v287 = vmax.f32 %v226, 0.0
  %v288 = vmax.f32 %v229, 0.0
  %v289 = vmax.f32 %v232, 0.0
  %v290 = vmax.f32 %v235, 0.0
  %v291 = vmax.f32 %v238, 0.0
  %v292 = vmax.f32 %v241, 0.0
  %v293 = vmax.f32 %v244, 0.0
  %v294 = vmax.f32 %v247, 0.0
  %v295 = vmax.f32 %v250, 0.0
  %v296 = vmax.f32 %v253, 0.0
  %v297 = vmax.f32 %v256, 0.0
  %v298 = vmax.f32 %v259, 0.0
  %v299 = vmax.f32 %v262, 0.0
  %v300 = vmax.f32 %v265, 0.0
  %v301 = vmax.f32 %v268, 0.0
  %v302 = vld [vmem:[%s3] sm:$0xff]
  %v303 = vld [vmem:[%s3 + $0x8] sm:$0xff]
  %v304 = vld [vmem:[%s3 + $0x10] sm:$0xff]
  %v305 = vld [vmem:[%s3 + $0x18] sm:$0xff]
  %v306 = vld [vmem:[%s3 + $0x20] sm:$0xff]
  %v307 = vld [vmem:[%s3 + $0x28] sm:$0xff]
  %v308 = vld [vmem:[%s3 + $0x30] sm:$0xff]
  %v309 = vld [vmem:[%s3 + $0x38] sm:$0xff]
  %v310 = vld [vmem:[%s3 + $0x40] sm:$0xff]
  %v311 = vld [vmem:[%s3 + $0x48] sm:$0xff]
  %v312 = vld [vmem:[%s3 + $0x50] sm:$0xff]
  %v313 = vld [vmem:[%s3 + $0x58] sm:$0xff]
  %v314 = vld [vmem:[%s3 + $0x60] sm:$0xff]
  %v315 = vld [vmem:[%s3 + $0x68] sm:$0xff]
  %v316 = vld [vmem:[%s3 + $0x70] sm:$0xff]
  %v317 = vld [vmem:[%s3 + $0x78] sm:$0xff]
  %v318 = vld [vmem:[%s4] sm:$0x1]
  %v320 = vperm.slane %v318, 0
  %322 = vmatpush.msra.mxu0 %v317
  %323 = vmatpush.msra.mxu0 %v316
  %324 = vmatpush.msra.mxu0 %v315
  %325 = vmatpush.msra.mxu0 %v314
  %326 = vmatpush.msra.mxu0 %v313
  %327 = vmatpush.msra.mxu0 %v312
  %328 = vmatpush.msra.mxu0 %v311
  %329 = vmatpush.msra.mxu0 %v310
  %330 = vmatpush.msra.mxu0 %v309
  %331 = vmatpush.msra.mxu0 %v308
  %332 = vmatpush.msra.mxu0 %v307
  %333 = vmatpush.msra.mxu0 %v306
  %334 = vmatpush.msra.mxu0 %v305
  %335 = vmatpush.msra.mxu0 %v304
  %336 = vmatpush.msra.mxu0 %v303
  %337 = vmatpush.msra.mxu0 %v302
  %338 = vmatmul.f32.gmra.mxu0 %v270
  %v339 = vpop.f32.mrf.mxu0
  %v340 = vadd.f32 %v320, %v339
  %341 = vmatmul.f32.gmra.mxu0 %v271
  %v342 = vpop.f32.mrf.mxu0
  %v343 = vadd.f32 %v320, %v342
  %344 = vmatmul.f32.gmra.mxu0 %v272
  %v345 = vpop.f32.mrf.mxu0
  %v346 = vadd.f32 %v320, %v345
  %347 = vmatmul.f32.gmra.mxu0 %v273
  %v348 = vpop.f32.mrf.mxu0
  %v349 = vadd.f32 %v320, %v348
  %350 = vmatmul.f32.gmra.mxu0 %v274
  %v351 = vpop.f32.mrf.mxu0
  %v352 = vadd.f32 %v320, %v351
  %353 = vmatmul.f32.gmra.mxu0 %v275
  %v354 = vpop.f32.mrf.mxu0
  %v355 = vadd.f32 %v320, %v354
  %356 = vmatmul.f32.gmra.mxu0 %v276
  %v357 = vpop.f32.mrf.mxu0
  %v358 = vadd.f32 %v320, %v357
  %359 = vmatmul.f32.gmra.mxu0 %v277
  %v360 = vpop.f32.mrf.mxu0
  %v361 = vadd.f32 %v320, %v360
  %362 = vmatmul.f32.gmra.mxu0 %v278
  %v363 = vpop.f32.mrf.mxu0
  %v364 = vadd.f32 %v320, %v363
  %365 = vmatmul.f32.gmra.mxu0 %v279
  %v366 = vpop.f32.mrf.mxu0
  %v367 = vadd.f32 %v320, %v366
  %368 = vmatmul.f32.gmra.mxu0 %v280
  %v369 = vpop.f32.mrf.mxu0
  %v370 = vadd.f32 %v320, %v369
  %371 = vmatmul.f32.gmra.mxu0 %v281
  %v372 = vpop.f32.mrf.mxu0
  %v373 = vadd.f32 %v320, %v372
  %374 = vmatmul.f32.gmra.mxu0 %v282
  %v375 = vpop.f32.mrf.mxu0
  %v376 = vadd.f32 %v320, %v375
  %377 = vmatmul.f32.gmra.mxu0 %v283
  %v378 = vpop.f32.mrf.mxu0
  %v379 = vadd.f32 %v320, %v378
  %380 = vmatmul.f32.gmra.mxu0 %v284
  %v381 = vpop.f32.mrf.mxu0
  %v382 = vadd.f32 %v320, %v381
  %383 = vmatmul.f32.gmra.mxu0 %v285
  %v384 = vpop.f32.mrf.mxu0
  %v385 = vadd.f32 %v320, %v384
  %386 = vmatmul.f32.gmra.mxu0 %v286
  %v387 = vpop.f32.mrf.mxu0
  %v388 = vadd.f32 %v320, %v387
  %389 = vmatmul.f32.gmra.mxu0 %v287
  %v390 = vpop.f32.mrf.mxu0
  %v391 = vadd.f32 %v320, %v390
  %392 = vmatmul.f32.gmra.mxu0 %v288
  %v393 = vpop.f32.mrf.mxu0
  %v394 = vadd.f32 %v320, %v393
  %395 = vmatmul.f32.gmra.mxu0 %v289
  %v396 = vpop.f32.mrf.mxu0
  %v397 = vadd.f32 %v320, %v396
  %398 = vmatmul.f32.gmra.mxu0 %v290
  %v399 = vpop.f32.mrf.mxu0
  %v400 = vadd.f32 %v320, %v399
  %401 = vmatmul.f32.gmra.mxu0 %v291
  %v402 = vpop.f32.mrf.mxu0
  %v403 = vadd.f32 %v320, %v402
  %404 = vmatmul.f32.gmra.mxu0 %v292
  %v405 = vpop.f32.mrf.mxu0
  %v406 = vadd.f32 %v320, %v405
  %407 = vmatmul.f32.gmra.mxu0 %v293
  %v408 = vpop.f32.mrf.mxu0
  %v409 = vadd.f32 %v320, %v408
  %410 = vmatmul.f32.gmra.mxu0 %v294
  %v411 = vpop.f32.mrf.mxu0
  %v412 = vadd.f32 %v320, %v411
  %413 = vmatmul.f32.gmra.mxu0 %v295
  %v414 = vpop.f32.mrf.mxu0
  %v415 = vadd.f32 %v320, %v414
  %416 = vmatmul.f32.gmra.mxu0 %v296
  %v417 = vpop.f32.mrf.mxu0
  %v418 = vadd.f32 %v320, %v417
  %419 = vmatmul.f32.gmra.mxu0 %v297
  %v420 = vpop.f32.mrf.mxu0
  %v421 = vadd.f32 %v320, %v420
  %422 = vmatmul.f32.gmra.mxu0 %v298
  %v423 = vpop.f32.mrf.mxu0
  %v424 = vadd.f32 %v320, %v423
  %425 = vmatmul.f32.gmra.mxu0 %v299
  %v426 = vpop.f32.mrf.mxu0
  %v427 = vadd.f32 %v320, %v426
  %428 = vmatmul.f32.gmra.mxu0 %v300
  %v429 = vpop.f32.mrf.mxu0
  %v430 = vadd.f32 %v320, %v429
  %431 = vmatmul.f32.gmra.mxu0 %v301
  %v432 = vpop.f32.mrf.mxu0
  %v433 = vadd.f32 %v320, %v432
  %434 = vdwg.mxu0
  %435 = vmax.xlane.f32.xlu0 %v340
  %v436 = vpop.xlane.xlu0 %435
  %437 = vmax.xlane.f32.xlu0 %v343
  %v438 = vpop.xlane.xlu0 %437
  %439 = vmax.xlane.f32.xlu0 %v346
  %v440 = vpop.xlane.xlu0 %439
  %441 = vmax.xlane.f32.xlu0 %v349
  %v442 = vpop.xlane.xlu0 %441
  %443 = vmax.xlane.f32.xlu0 %v352
  %v444 = vpop.xlane.xlu0 %443
  %445 = vmax.xlane.f32.xlu0 %v355
  %v446 = vpop.xlane.xlu0 %445
  %447 = vmax.xlane.f32.xlu0 %v358
  %v448 = vpop.xlane.xlu0 %447
  %449 = vmax.xlane.f32.xlu0 %v361
  %v450 = vpop.xlane.xlu0 %449
  %451 = vmax.xlane.f32.xlu0 %v364
  %v452 = vpop.xlane.xlu0 %451
  %453 = vmax.xlane.f32.xlu0 %v367
  %v454 = vpop.xlane.xlu0 %453
  %455 = vmax.xlane.f32.xlu0 %v370
  %v456 = vpop.xlane.xlu0 %455
  %457 = vmax.xlane.f32.xlu0 %v373
  %v458 = vpop.xlane.xlu0 %457
  %459 = vmax.xlane.f32.xlu0 %v376
  %v460 = vpop.xlane.xlu0 %459
  %461 = vmax.xlane.f32.xlu0 %v379
  %v462 = vpop.xlane.xlu0 %461
  %463 = vmax.xlane.f32.xlu0 %v382
  %v464 = vpop.xlane.xlu0 %463
  %465 = vmax.xlane.f32.xlu0 %v385
  %v466 = vpop.xlane.xlu0 %465
  %467 = vmax.xlane.f32.xlu0 %v388
  %v468 = vpop.xlane.xlu0 %467
  %469 = vmax.xlane.f32.xlu0 %v391
  %v470 = vpop.xlane.xlu0 %469
  %471 = vmax.xlane.f32.xlu0 %v394
  %v472 = vpop.xlane.xlu0 %471
  %473 = vmax.xlane.f32.xlu0 %v397
  %v474 = vpop.xlane.xlu0 %473
  %475 = vmax.xlane.f32.xlu0 %v400
  %v476 = vpop.xlane.xlu0 %475
  %477 = vmax.xlane.f32.xlu0 %v403
  %v478 = vpop.xlane.xlu0 %477
  %479 = vmax.xlane.f32.xlu0 %v406
  %v480 = vpop.xlane.xlu0 %479
  %481 = vmax.xlane.f32.xlu0 %v409
  %v482 = vpop.xlane.xlu0 %481
  %483 = vmax.xlane.f32.xlu0 %v412
  %v484 = vpop.xlane.xlu0 %483
  %485 = vmax.xlane.f32.xlu0 %v415
  %v486 = vpop.xlane.xlu0 %485
  %487 = vmax.xlane.f32.xlu0 %v418
  %v488 = vpop.xlane.xlu0 %487
  %489 = vmax.xlane.f32.xlu0 %v421
  %v490 = vpop.xlane.xlu0 %489
  %491 = vmax.xlane.f32.xlu0 %v424
  %v492 = vpop.xlane.xlu0 %491
  %493 = vmax.xlane.f32.xlu0 %v427
  %v494 = vpop.xlane.xlu0 %493
  %495 = vmax.xlane.f32.xlu0 %v430
  %v496 = vpop.xlane.xlu0 %495
  %497 = vmax.xlane.f32.xlu0 %v433
  %v498 = vpop.xlane.xlu0 %497
  %v499 = vsub.f32 %v340, %v436
  %v500 = vsub.f32 %v343, %v438
  %v501 = vsub.f32 %v346, %v440
  %v502 = vsub.f32 %v349, %v442
  %v503 = vsub.f32 %v352, %v444
  %v504 = vsub.f32 %v355, %v446
  %v505 = vsub.f32 %v358, %v448
  %v506 = vsub.f32 %v361, %v450
  %v507 = vsub.f32 %v364, %v452
  %v508 = vsub.f32 %v367, %v454
  %v509 = vsub.f32 %v370, %v456
  %v510 = vsub.f32 %v373, %v458
  %v511 = vsub.f32 %v376, %v460
  %v512 = vsub.f32 %v379, %v462
  %v513 = vsub.f32 %v382, %v464
  %v514 = vsub.f32 %v385, %v466
  %v515 = vsub.f32 %v388, %v468
  %v516 = vsub.f32 %v391, %v470
  %v517 = vsub.f32 %v394, %v472
  %v518 = vsub.f32 %v397, %v474
  %v519 = vsub.f32 %v400, %v476
  %v520 = vsub.f32 %v403, %v478
  %v521 = vsub.f32 %v406, %v480
  %v522 = vsub.f32 %v409, %v482
  %v523 = vsub.f32 %v412, %v484
  %v524 = vsub.f32 %v415, %v486
  %v525 = vsub.f32 %v418, %v488
  %v526 = vsub.f32 %v421, %v490
  %v527 = vsub.f32 %v424, %v492
  %v528 = vsub.f32 %v427, %v494
  %v529 = vsub.f32 %v430, %v496
  %v530 = vsub.f32 %v433, %v498
  %v531 = vmul.f32 %v499, 1.442695
  %v532 = vpow.pop %v531
  %v533 = vmul.f32 %v500, 1.442695
  %v534 = vpow.pop %v533
  %v535 = vmul.f32 %v501, 1.442695
  %v536 = vpow.pop %v535
  %v537 = vmul.f32 %v502, 1.442695
  %v538 = vpow.pop %v537
  %v539 = vmul.f32 %v503, 1.442695
  %v540 = vpow.pop %v539
  %v541 = vmul.f32 %v504, 1.442695
  %v542 = vpow.pop %v541
  %v543 = vmul.f32 %v505, 1.442695
  %v544 = vpow.pop %v543
  %v545 = vmul.f32 %v506, 1.442695
  %v546 = vpow.pop %v545
  %v547 = vmul.f32 %v507, 1.442695
  %v548 = vpow.pop %v547
  %v549 = vmul.f32 %v508, 1.442695
  %v550 = vpow.pop %v549
  %v551 = vmul.f32 %v509, 1.442695
  %v552 = vpow.pop %v551
  %v553 = vmul.f32 %v510, 1.442695
  %v554 = vpow.pop %v553
  %v555 = vmul.f32 %v511, 1.442695
  %v556 = vpow.pop %v555
  %v557 = vmul.f32 %v512, 1.442695
  %v558 = vpow.pop %v557
  %v559 = vmul.f32 %v513, 1.442695
  %v560 = vpow.pop %v559
  %v561 = vmul.f32 %v514, 1.442695
  %v562 = vpow.pop %v561
  %v563 = vmul.f32 %v515, 1.442695
  %v564 = vpow.pop %v563
  %v565 = vmul.f32 %v516, 1.442695
  %v566 = vpow.pop %v565
  %v567 = vmul.f32 %v517, 1.442695
  %v568 = vpow.pop %v567
  %v569 = vmul.f32 %v518, 1.442695
  %v570 = vpow.pop %v569
  %v571 = vmul.f32 %v519, 1.442695
  %v572 = vpow.pop %v571
  %v573 = vmul.f32 %v520, 1.442695
  %v574 = vpow.pop %v573
  %v575 = vmul.f32 %v521, 1.442695
  %v576 = vpow.pop %v575
  %v577 = vmul.f32 %v522, 1.442695
  %v578 = vpow.pop %v577
  %v579 = vmul.f32 %v523, 1.442695
  %v580 = vpow.pop %v579
  %v581 = vmul.f32 %v524, 1.442695
  %v582 = vpow.pop %v581
  %v583 = vmul.f32 %v525, 1.442695
  %v584 = vpow.pop %v583
  %v585 = vmul.f32 %v526, 1.442695
  %v586 = vpow.pop %v585
  %v587 = vmul.f32 %v527, 1.442695
  %v588 = vpow.pop %v587
  %v589 = vmul.f32 %v528, 1.442695
  %v590 = vpow.pop %v589
  %v591 = vmul.f32 %v529, 1.442695
  %v592 = vpow.pop %v591
  %v593 = vmul.f32 %v530, 1.442695
  %v594 = vpow.pop %v593
  %595 = vadd.xlane.f32.xlu0 %v532
  %v596 = vpop.xlane.xlu0 %595
  %597 = vadd.xlane.f32.xlu0 %v534
  %v598 = vpop.xlane.xlu0 %597
  %599 = vadd.xlane.f32.xlu0 %v536
  %v600 = vpop.xlane.xlu0 %599
  %601 = vadd.xlane.f32.xlu0 %v538
  %v602 = vpop.xlane.xlu0 %601
  %603 = vadd.xlane.f32.xlu0 %v540
  %v604 = vpop.xlane.xlu0 %603
  %605 = vadd.xlane.f32.xlu0 %v542
  %v606 = vpop.xlane.xlu0 %605
  %607 = vadd.xlane.f32.xlu0 %v544
  %v608 = vpop.xlane.xlu0 %607
  %609 = vadd.xlane.f32.xlu0 %v546
  %v610 = vpop.xlane.xlu0 %609
  %611 = vadd.xlane.f32.xlu0 %v548
  %v612 = vpop.xlane.xlu0 %611
  %613 = vadd.xlane.f32.xlu0 %v550
  %v614 = vpop.xlane.xlu0 %613
  %615 = vadd.xlane.f32.xlu0 %v552
  %v616 = vpop.xlane.xlu0 %615
  %617 = vadd.xlane.f32.xlu0 %v554
  %v618 = vpop.xlane.xlu0 %617
  %619 = vadd.xlane.f32.xlu0 %v556
  %v620 = vpop.xlane.xlu0 %619
  %621 = vadd.xlane.f32.xlu0 %v558
  %v622 = vpop.xlane.xlu0 %621
  %623 = vadd.xlane.f32.xlu0 %v560
  %v624 = vpop.xlane.xlu0 %623
  %625 = vadd.xlane.f32.xlu0 %v562
  %v626 = vpop.xlane.xlu0 %625
  %627 = vadd.xlane.f32.xlu0 %v564
  %v628 = vpop.xlane.xlu0 %627
  %629 = vadd.xlane.f32.xlu0 %v566
  %v630 = vpop.xlane.xlu0 %629
  %631 = vadd.xlane.f32.xlu0 %v568
  %v632 = vpop.xlane.xlu0 %631
  %633 = vadd.xlane.f32.xlu0 %v570
  %v634 = vpop.xlane.xlu0 %633
  %635 = vadd.xlane.f32.xlu0 %v572
  %v636 = vpop.xlane.xlu0 %635
  %637 = vadd.xlane.f32.xlu0 %v574
  %v638 = vpop.xlane.xlu0 %637
  %639 = vadd.xlane.f32.xlu0 %v576
  %v640 = vpop.xlane.xlu0 %639
  %641 = vadd.xlane.f32.xlu0 %v578
  %v642 = vpop.xlane.xlu0 %641
  %643 = vadd.xlane.f32.xlu0 %v580
  %v644 = vpop.xlane.xlu0 %643
  %645 = vadd.xlane.f32.xlu0 %v582
  %v646 = vpop.xlane.xlu0 %645
  %647 = vadd.xlane.f32.xlu0 %v584
  %v648 = vpop.xlane.xlu0 %647
  %649 = vadd.xlane.f32.xlu0 %v586
  %v650 = vpop.xlane.xlu0 %649
  %651 = vadd.xlane.f32.xlu0 %v588
  %v652 = vpop.xlane.xlu0 %651
  %653 = vadd.xlane.f32.xlu0 %v590
  %v654 = vpop.xlane.xlu0 %653
  %655 = vadd.xlane.f32.xlu0 %v592
  %v656 = vpop.xlane.xlu0 %655
  %657 = vadd.xlane.f32.xlu0 %v594
  %v658 = vpop.xlane.xlu0 %657
  %v659 = vlog2.pop %v596
  %v660 = vmul.f32 %v659, 0.6931472
  %v661 = vlog2.pop %v598
  %v662 = vmul.f32 %v661, 0.6931472
  %v663 = vlog2.pop %v600
  %v664 = vmul.f32 %v663, 0.6931472
  %v665 = vlog2.pop %v602
  %v666 = vmul.f32 %v665, 0.6931472
  %v667 = vlog2.pop %v604
  %v668 = vmul.f32 %v667, 0.6931472
  %v669 = vlog2.pop %v606
  %v670 = vmul.f32 %v669, 0.6931472
  %v671 = vlog2.pop %v608
  %v672 = vmul.f32 %v671, 0.6931472
  %v673 = vlog2.pop %v610
  %v674 = vmul.f32 %v673, 0.6931472
  %v675 = vlog2.pop %v612
  %v676 = vmul.f32 %v675, 0.6931472
  %v677 = vlog2.pop %v614
  %v678 = vmul.f32 %v677, 0.6931472
  %v679 = vlog2.pop %v616
  %v680 = vmul.f32 %v679, 0.6931472
  %v681 = vlog2.pop %v618
  %v682 = vmul.f32 %v681, 0.6931472
  %v683 = vlog2.pop %v620
  %v684 = vmul.f32 %v683, 0.6931472
  %v685 = vlog2.pop %v622
  %v686 = vmul.f32 %v685, 0.6931472
  %v687 = vlog2.pop %v624
  %v688 = vmul.f32 %v687, 0.6931472
  %v689 = vlog2.pop %v626
  %v690 = vmul.f32 %v689, 0.6931472
  %v691 = vlog2.pop %v628
  %v692 = vmul.f32 %v691, 0.6931472
  %v693 = vlog2.pop %v630
  %v694 = vmul.f32 %v693, 0.6931472
  %v695 = vlog2.pop %v632
  %v696 = vmul.f32 %v695, 0.6931472
  %v697 = vlog2.pop %v634
  %v698 = vmul.f32 %v697, 0.6931472
  %v699 = vlog2.pop %v636
  %v700 = vmul.f32 %v699, 0.6931472
  %v701 = vlog2.pop %v638
  %v702 = vmul.f32 %v701, 0.6931472
  %v703 = vlog2.pop %v640
  %v704 = vmul.f32 %v703, 0.6931472
  %v705 = vlog2.pop %v642
  %v706 = vmul.f32 %v705, 0.6931472
  %v707 = vlog2.pop %v644
  %v708 = vmul.f32 %v707, 0.6931472
  %v709 = vlog2.pop %v646
  %v710 = vmul.f32 %v709, 0.6931472
  %v711 = vlog2.pop %v648
  %v712 = vmul.f32 %v711, 0.6931472
  %v713 = vlog2.pop %v650
  %v714 = vmul.f32 %v713, 0.6931472
  %v715 = vlog2.pop %v652
  %v716 = vmul.f32 %v715, 0.6931472
  %v717 = vlog2.pop %v654
  %v718 = vmul.f32 %v717, 0.6931472
  %v719 = vlog2.pop %v656
  %v720 = vmul.f32 %v719, 0.6931472
  %v721 = vlog2.pop %v658
  %v722 = vmul.f32 %v721, 0.6931472
  %v723 = vsub.f32 %v499, %v660
  %v724 = vsub.f32 %v500, %v662
  %v725 = vsub.f32 %v501, %v664
  %v726 = vsub.f32 %v502, %v666
  %v727 = vsub.f32 %v503, %v668
  %v728 = vsub.f32 %v504, %v670
  %v729 = vsub.f32 %v505, %v672
  %v730 = vsub.f32 %v506, %v674
  %v731 = vsub.f32 %v507, %v676
  %v732 = vsub.f32 %v508, %v678
  %v733 = vsub.f32 %v509, %v680
  %v734 = vsub.f32 %v510, %v682
  %v735 = vsub.f32 %v511, %v684
  %v736 = vsub.f32 %v512, %v686
  %v737 = vsub.f32 %v513, %v688
  %v738 = vsub.f32 %v514, %v690
  %v739 = vsub.f32 %v515, %v692
  %v740 = vsub.f32 %v516, %v694
  %v741 = vsub.f32 %v517, %v696
  %v742 = vsub.f32 %v518, %v698
  %v743 = vsub.f32 %v519, %v700
  %v744 = vsub.f32 %v520, %v702
  %v745 = vsub.f32 %v521, %v704
  %v746 = vsub.f32 %v522, %v706
  %v747 = vsub.f32 %v523, %v708
  %v748 = vsub.f32 %v524, %v710
  %v749 = vsub.f32 %v525, %v712
  %v750 = vsub.f32 %v526, %v714
  %v751 = vsub.f32 %v527, %v716
  %v752 = vsub.f32 %v528, %v718
  %v753 = vsub.f32 %v529, %v720
  %v754 = vsub.f32 %v530, %v722
  %755 = vst [vmem:[%s5] sm:$0xff] %v723
  %756 = vst [vmem:[%s5 + $0x8] sm:$0xff] %v724
  %757 = vst [vmem:[%s5 + $0x10] sm:$0xff] %v725
  %758 = vst [vmem:[%s5 + $0x18] sm:$0xff] %v726
  %759 = vst [vmem:[%s5 + $0x20] sm:$0xff] %v727
  %760 = vst [vmem:[%s5 + $0x28] sm:$0xff] %v728
  %761 = vst [vmem:[%s5 + $0x30] sm:$0xff] %v729
  %762 = vst [vmem:[%s5 + $0x38] sm:$0xff] %v730
  %763 = vst [vmem:[%s5 + $0x40] sm:$0xff] %v731
  %764 = vst [vmem:[%s5 + $0x48] sm:$0xff] %v732
  %765 = vst [vmem:[%s5 + $0x50] sm:$0xff] %v733
  %766 = vst [vmem:[%s5 + $0x58] sm:$0xff] %v734
  %767 = vst [vmem:[%s5 + $0x60] sm:$0xff] %v735
  %768 = vst [vmem:[%s5 + $0x68] sm:$0xff] %v736
  %769 = vst [vmem:[%s5 + $0x70] sm:$0xff] %v737
  %770 = vst [vmem:[%s5 + $0x78] sm:$0xff] %v738
  %771 = vst [vmem:[%s5 + $0x80] sm:$0xff] %v739
  %772 = vst [vmem:[%s5 + $0x88] sm:$0xff] %v740
  %773 = vst [vmem:[%s5 + $0x90] sm:$0xff] %v741
  %774 = vst [vmem:[%s5 + $0x98] sm:$0xff] %v742
  %775 = vst [vmem:[%s5 + $0xa0] sm:$0xff] %v743
  %776 = vst [vmem:[%s5 + $0xa8] sm:$0xff] %v744
  %777 = vst [vmem:[%s5 + $0xb0] sm:$0xff] %v745
  %778 = vst [vmem:[%s5 + $0xb8] sm:$0xff] %v746
  %779 = vst [vmem:[%s5 + $0xc0] sm:$0xff] %v747
  %780 = vst [vmem:[%s5 + $0xc8] sm:$0xff] %v748
  %781 = vst [vmem:[%s5 + $0xd0] sm:$0xff] %v749
  %782 = vst [vmem:[%s5 + $0xd8] sm:$0xff] %v750
  %783 = vst [vmem:[%s5 + $0xe0] sm:$0xff] %v751
  %784 = vst [vmem:[%s5 + $0xe8] sm:$0xff] %v752
  %785 = vst [vmem:[%s5 + $0xf0] sm:$0xff] %v753
  %786 = vst [vmem:[%s5 + $0xf8] sm:$0xff] %v754
  // Predicated region
  $region22: #{classifier_forward.1} parent=0 // pred_check
    _
  $region23: #{classifier_forward.1} parent=0 // pred_check_branch
    %788 = sbr.rel (0) target = $region25
  $region24: #{classifier_forward.1} parent=0 // pred_region
    _
  $region25: #{classifier_forward.1} parent=0 // pred_fallthru
    _
  // Predicated region
  $region26: #{classifier_forward.1} parent=0 // pred_check
    _
  $region27: #{classifier_forward.1} parent=0 // pred_check_branch
    %790 = sbr.rel (0) target = $region29
  $region28: #{classifier_forward.1} parent=0 // pred_region
    _
  $region29: #{classifier_forward.1} parent=0 // pred_fallthru
    _

</llo_original>
